<compile_context>
chip_gen: v7x
topology: tpu7x:2x2x1
jax: 0.10.0
libtpu: 0.0.40
codegen_flags: <defaults>
</compile_context>

<pallas_src>
import jax
import jax.numpy as jnp
from jax.experimental import pallas as pl
from jax.experimental.pallas import tpu as pltpu

NUM_LAYERS = 2       # args.num_layers (must be >= 2)
HIDDEN = 32          # args.hidden_channels
N_NODES = 16         # total nodes in the batched graph
N_GRAPHS = 2         # batch of graphs
EPS = 0.0            # GIN epsilon

LANE = 128           # lane width  -> last-dim padding target
SUBLANE = 8          # sublane width


def _round_up(x, m):
    return ((x + m - 1) // m) * m


# ---------------------------------------------------------------------------
# Kernels
# ---------------------------------------------------------------------------
def _gnn_node_embed(adj_ref, h0_ref, w_ref, b_ref):
    """Shared GIN-style node-embedding stack.

    adj_ref : [Np, Np] bf16  dense adjacency with (1+eps)*I folded in
    h0_ref  : [Np, Cp] f32   input node embeddings
    w_ref   : [L, Cp, Cp] bf16 per-layer linear weights
    b_ref   : [L, 1, Cp] f32 per-layer biases
    Matmul operands in bf16 (f32 accumulate); elementwise path stays f32.
    """
    a = adj_ref[...]
    h = h0_ref[...]
    num_layers = w_ref.shape[0]
    for l in range(num_layers):                      # static, short loop
        agg = jnp.dot(a, h.astype(jnp.bfloat16),
                      preferred_element_type=jnp.float32)
        h = jnp.dot(agg.astype(jnp.bfloat16), w_ref[l],
                    preferred_element_type=jnp.float32) + b_ref[l]
        if l < num_layers - 1:                       # JK='last'
            h = jnp.maximum(h, 0.0)
    return h


def pretrain_kernel(adj_ref, h0_ref, w_ref, b_ref, whead_ref, bhead_ref,
                    out_ref):
    """task_type=='pretrain': fused [mean_layer | std_layer] head."""
    h = _gnn_node_embed(adj_ref, h0_ref, w_ref, b_ref)
    out_ref[...] = (jnp.dot(h.astype(jnp.bfloat16), whead_ref[...],
                            preferred_element_type=jnp.float32)
                    + bhead_ref[...])


def finetune_kernel(adj_ref, h0_ref, w_ref, b_ref, pool_ref, graph_ref):
    """task_type!='pretrain': global_add_pool(h_node, batch)."""
    h = _gnn_node_embed(adj_ref, h0_ref, w_ref, b_ref)
    graph_ref[...] = jnp.dot(pool_ref[...], h.astype(jnp.bfloat16),
                             preferred_element_type=jnp.float32)


# ---------------------------------------------------------------------------
# Wrapper
# ---------------------------------------------------------------------------
def gnn_forward(adj, h0, layer_w, layer_b, wm, bm, ws, bs, pool_mat,
                task_type='pretrain'):
    n, c = h0.shape
    g = pool_mat.shape[0]
    num_layers = layer_w.shape[0]

    np_ = _round_up(max(n, LANE), LANE)     # nodes: lane-dense (adjacency lanes)
    cp = _round_up(max(c, LANE), LANE)      # channels: lane-dense
    gp = _round_up(g, SUBLANE)              # graphs: sublane-aligned

    # ---- pad to lane-dense shapes (zero padding, layout plumbing only) ----
    adj_p = jnp.zeros((np_, np_), jnp.bfloat16).at[:n, :n].set(
        adj.astype(jnp.bfloat16))
    h0_p = jnp.zeros((np_, cp), jnp.float32).at[:n, :c].set(h0)
    w_p = jnp.zeros((num_layers, cp, cp), jnp.bfloat16).at[:, :c, :c].set(
        layer_w.astype(jnp.bfloat16))
    b_p = jnp.zeros((num_layers, 1, cp), jnp.float32).at[:, :, :c].set(layer_b)

    vmem = pl.BlockSpec(memory_space=pltpu.MemorySpace.VMEM)
    layer_flops = 2 * num_layers * (np_ * np_ * cp + np_ * cp * cp)

    if task_type == 'pretrain':
        # Fuse mean_layer / std_layer into one wide head matmul.
        whead = jnp.zeros((cp, 2 * cp), jnp.bfloat16)
        whead = whead.at[:c, :c].set(wm.astype(jnp.bfloat16))
        whead = whead.at[:c, cp:cp + c].set(ws.astype(jnp.bfloat16))
        bhead = jnp.zeros((1, 2 * cp), jnp.float32)
        bhead = bhead.at[:, :c].set(bm)
        bhead = bhead.at[:, cp:cp + c].set(bs)

        args = (adj_p, h0_p, w_p, b_p, whead, bhead)
        cost = pl.CostEstimate(
            flops=layer_flops + 2 * np_ * cp * (2 * cp),
            transcendentals=0,
            bytes_accessed=sum(int(a.size) * a.dtype.itemsize for a in args)
            + np_ * 2 * cp * 4)
        out = pl.pallas_call(
            pretrain_kernel,
            out_shape=jax.ShapeDtypeStruct((np_, 2 * cp), jnp.float32),
            in_specs=[vmem] * len(args),
            out_specs=vmem,
            cost_estimate=cost,
        )(*args)
        mean_out = out[:n, :c]
        std_out = out[:n, cp:cp + c]
        return mean_out, std_out

    # Non-pretrain: only the pooled graph embedding is computed.
    pool_p = jnp.zeros((gp, np_), jnp.bfloat16).at[:g, :n].set(
        pool_mat.astype(jnp.bfloat16))
    args = (adj_p, h0_p, w_p, b_p, pool_p)
    cost = pl.CostEstimate(
        flops=layer_flops + 2 * gp * np_ * cp,
        transcendentals=0,
        bytes_accessed=sum(int(a.size) * a.dtype.itemsize for a in args)
        + gp * cp * 4)
    graph_out = pl.pallas_call(
        finetune_kernel,
        out_shape=jax.ShapeDtypeStruct((gp, cp), jnp.float32),
        in_specs=[vmem] * len(args),
        out_specs=vmem,
        cost_estimate=cost,
    )(*args)
    return graph_out[:g, :c]


# ---------------------------------------------------------------------------
# Reference (pure JAX, f32) and example inputs
# ---------------------------------------------------------------------------
def _reference_forward(adj, h0, layer_w, layer_b, wm, bm, ws, bs, pool_mat):
    h = h0
    num_layers = layer_w.shape[0]
    for l in range(num_layers):
        h = adj @ h @ layer_w[l] + layer_b[l]
        if l < num_layers - 1:
            h = jnp.maximum(h, 0.0)
    return h @ wm + bm, h @ ws + bs, pool_mat @ h


def _init_linear(key, fan_in, fan_out):
    """Deterministic nn.Linear-like init (uniform +- 1/sqrt(fan_in))."""
    kw, kb = jax.random.split(key)
    bound = 1.0 / jnp.sqrt(fan_in)
    w = jax.random.uniform(kw, (fan_in, fan_out), jnp.float32, -bound, bound)
    b = jax.random.uniform(kb, (1, fan_out), jnp.float32, -bound, bound)
    return w, b


def _relerr(x, ref):
    return float(jnp.linalg.norm(x - ref) / (jnp.linalg.norm(ref) + 1e-8))


if __name__ == "__main__":
    key = jax.random.PRNGKey(0)
    k_h, k_layers, k_mean, k_std = jax.random.split(key, 4)

    # Batched graph: two ring graphs of 8 nodes each, block-diagonal adjacency.
    adj = jnp.zeros((N_NODES, N_NODES), jnp.float32)
    per_graph = N_NODES // N_GRAPHS
    for gidx in range(N_GRAPHS):
        base = gidx * per_graph
        for i in range(per_graph):
            src = base + i
            dst = base + (i + 1) % per_graph
            adj = adj.at[src, dst].set(1.0)
            adj = adj.at[dst, src].set(1.0)
    adj = adj + (1.0 + EPS) * jnp.eye(N_NODES, dtype=jnp.float32)

    # batched_data.batch -> one-hot pooling matrix [G, N] (global_add_pool).
    batch_ids = jnp.repeat(jnp.arange(N_GRAPHS), per_graph)
    pool_mat = (batch_ids[None, :] == jnp.arange(N_GRAPHS)[:, None]
                ).astype(jnp.float32)

    # Input node embeddings (stands in for the atom encoder output).
    h0 = jax.random.normal(k_h, (N_NODES, HIDDEN), jnp.float32)

    # Per-layer GIN linear params, stacked.
    layer_keys = jax.random.split(k_layers, NUM_LAYERS)
    ws_list, bs_list = [], []
    for lk in layer_keys:
        w, b = _init_linear(lk, HIDDEN, HIDDEN)
        ws_list.append(w)
        bs_list.append(b)
    layer_w = jnp.stack(ws_list)                     # [L, C, C]
    layer_b = jnp.stack(bs_list)                     # [L, 1, C]

    wm, bm = _init_linear(k_mean, HIDDEN, HIDDEN)    # mean_layer
    wstd, bstd = _init_linear(k_std, HIDDEN, HIDDEN)  # std_layer

    # task_type='pretrain' -> (mean_layer(h_node), std_layer(h_node))
    mean_out, std_out = jax.block_until_ready(
        gnn_forward(adj, h0, layer_w, layer_b, wm, bm, wstd, bstd, pool_mat,
                    task_type='pretrain'))
    # non-pretrain -> pooled graph embedding (only this output is computed)
    h_graph = jax.block_until_ready(
        gnn_forward(adj, h0, layer_w, layer_b, wm, bm, wstd, bstd, pool_mat,
                    task_type='finetune'))

    assert mean_out.shape == (N_NODES, HIDDEN)
    assert std_out.shape == (N_NODES, HIDDEN)
    assert h_graph.shape == (N_GRAPHS, HIDDEN)
    assert jnp.all(jnp.isfinite(mean_out)) and jnp.all(jnp.isfinite(std_out))
    assert jnp.all(jnp.isfinite(h_graph))

    mean_ref, std_ref, graph_ref = _reference_forward(
        adj, h0, layer_w, layer_b, wm, bm, wstd, bstd, pool_mat)
    # bf16 MXU operands with f32 accumulation -> ~1% relative error budget.
    assert _relerr(mean_out, mean_ref) < 3e-2
    assert _relerr(std_out, std_ref) < 3e-2
    assert _relerr(h_graph, graph_ref) < 3e-2

    print("KERNEL_OK")
</pallas_src>

<mosaic_0001>
module attributes {stable_mosaic.version = 11 : i64} {
  func.func @pretrain_kernel(%arg0: memref<128x128xbf16, #tpu.memory_space<vmem>>, %arg1: memref<128x128xf32, #tpu.memory_space<vmem>>, %arg2: memref<2x128x128xbf16, #tpu.memory_space<vmem>>, %arg3: memref<2x1x128xf32, #tpu.memory_space<vmem>>, %arg4: memref<128x256xbf16, #tpu.memory_space<vmem>>, %arg5: memref<1x256xf32, #tpu.memory_space<vmem>>, %arg6: memref<128x256xf32, #tpu.memory_space<vmem>>) attributes {dimension_semantics = [], scalar_prefetch = 0 : i64, scratch_operands = 0 : i64, tpu.core_type = #tpu.core_type<tc>} {
    %c0 = arith.constant 0 : index
    %c0_0 = arith.constant 0 : index
    %0 = vector.load %arg0[%c0, %c0_0] : memref<128x128xbf16, #tpu.memory_space<vmem>>, vector<128x128xbf16>
    %c0_1 = arith.constant 0 : index
    %c0_2 = arith.constant 0 : index
    %1 = vector.load %arg1[%c0_1, %c0_2] : memref<128x128xf32, #tpu.memory_space<vmem>>, vector<128x128xf32>
    %2 = arith.truncf %1 : vector<128x128xf32> to vector<128x128xbf16>
    %cst = arith.constant dense<0.000000e+00> : vector<128x128xf32>
    %3 = tpu.matmul %0, %2, %cst {dimension_numbers = #tpu.dot_dimension_numbers<[1], [0], [0], [1], [0, 0, 1, 1], [], []>} : vector<128x128xbf16>, vector<128x128xbf16>, vector<128x128xf32> -> vector<128x128xf32>
    %4 = arith.truncf %3 : vector<128x128xf32> to vector<128x128xbf16>
    %c0_3 = arith.constant 0 : index
    %c0_4 = arith.constant 0 : index
    %c0_5 = arith.constant 0 : index
    %5 = vector.load %arg2[%c0_3, %c0_4, %c0_5] : memref<2x128x128xbf16, #tpu.memory_space<vmem>>, vector<1x128x128xbf16>
    %6 = vector.shape_cast %5 : vector<1x128x128xbf16> to vector<128x128xbf16>
    %cst_6 = arith.constant dense<0.000000e+00> : vector<128x128xf32>
    %7 = tpu.matmul %4, %6, %cst_6 {dimension_numbers = #tpu.dot_dimension_numbers<[1], [0], [0], [1], [0, 0, 1, 1], [], []>} : vector<128x128xbf16>, vector<128x128xbf16>, vector<128x128xf32> -> vector<128x128xf32>
    %c0_7 = arith.constant 0 : index
    %c0_8 = arith.constant 0 : index
    %c0_9 = arith.constant 0 : index
    %8 = vector.load %arg3[%c0_7, %c0_8, %c0_9] : memref<2x1x128xf32, #tpu.memory_space<vmem>>, vector<1x1x128xf32>
    %9 = vector.shape_cast %8 : vector<1x1x128xf32> to vector<1x128xf32>
    %10 = vector.broadcast %9 : vector<1x128xf32> to vector<128x128xf32>
    %11 = arith.addf %7, %10 : vector<128x128xf32>
    %cst_10 = arith.constant 0.000000e+00 : f32
    %12 = vector.broadcast %cst_10 : f32 to vector<128x128xf32>
    %13 = arith.maximumf %11, %12 : vector<128x128xf32>
    %14 = arith.truncf %13 : vector<128x128xf32> to vector<128x128xbf16>
    %cst_11 = arith.constant dense<0.000000e+00> : vector<128x128xf32>
    %15 = tpu.matmul %0, %14, %cst_11 {dimension_numbers = #tpu.dot_dimension_numbers<[1], [0], [0], [1], [0, 0, 1, 1], [], []>} : vector<128x128xbf16>, vector<128x128xbf16>, vector<128x128xf32> -> vector<128x128xf32>
    %16 = arith.truncf %15 : vector<128x128xf32> to vector<128x128xbf16>
    %c1 = arith.constant 1 : index
    %c0_12 = arith.constant 0 : index
    %c0_13 = arith.constant 0 : index
    %17 = vector.load %arg2[%c1, %c0_12, %c0_13] : memref<2x128x128xbf16, #tpu.memory_space<vmem>>, vector<1x128x128xbf16>
    %18 = vector.shape_cast %17 : vector<1x128x128xbf16> to vector<128x128xbf16>
    %cst_14 = arith.constant dense<0.000000e+00> : vector<128x128xf32>
    %19 = tpu.matmul %16, %18, %cst_14 {dimension_numbers = #tpu.dot_dimension_numbers<[1], [0], [0], [1], [0, 0, 1, 1], [], []>} : vector<128x128xbf16>, vector<128x128xbf16>, vector<128x128xf32> -> vector<128x128xf32>
    %c1_15 = arith.constant 1 : index
    %c0_16 = arith.constant 0 : index
    %c0_17 = arith.constant 0 : index
    %20 = vector.load %arg3[%c1_15, %c0_16, %c0_17] : memref<2x1x128xf32, #tpu.memory_space<vmem>>, vector<1x1x128xf32>
    %21 = vector.shape_cast %20 : vector<1x1x128xf32> to vector<1x128xf32>
    %22 = vector.broadcast %21 : vector<1x128xf32> to vector<128x128xf32>
    %23 = arith.addf %19, %22 : vector<128x128xf32>
    %24 = arith.truncf %23 : vector<128x128xf32> to vector<128x128xbf16>
    %c0_18 = arith.constant 0 : index
    %c0_19 = arith.constant 0 : index
    %25 = vector.load %arg4[%c0_18, %c0_19] : memref<128x256xbf16, #tpu.memory_space<vmem>>, vector<128x256xbf16>
    %cst_20 = arith.constant dense<0.000000e+00> : vector<128x256xf32>
    %26 = tpu.matmul %24, %25, %cst_20 {dimension_numbers = #tpu.dot_dimension_numbers<[1], [0], [0], [1], [0, 0, 1, 1], [], []>} : vector<128x128xbf16>, vector<128x256xbf16>, vector<128x256xf32> -> vector<128x256xf32>
    %c0_21 = arith.constant 0 : index
    %c0_22 = arith.constant 0 : index
    %27 = vector.load %arg5[%c0_21, %c0_22] : memref<1x256xf32, #tpu.memory_space<vmem>>, vector<1x256xf32>
    %28 = vector.broadcast %27 : vector<1x256xf32> to vector<128x256xf32>
    %29 = arith.addf %26, %28 : vector<128x256xf32>
    %c0_23 = arith.constant 0 : index
    %c0_24 = arith.constant 0 : index
    %30 = vector.load %arg6[%c0_23, %c0_24] : memref<128x256xf32, #tpu.memory_space<vmem>>, vector<128x256xf32>
    tpu.vector_store %arg6[%c0_23, %c0_24], %29 {strides = array<i32>} : memref<128x256xf32, #tpu.memory_space<vmem>>, vector<128x256xf32>,
    return
  }
}

</mosaic_0001>

<llo_original>
// kernel: tpu_custom_call.1
$region0: #{tpu_custom_call.1}
  #allocation0 [shape = 'u32[]', space=smem, size = 0x4, offset = 0x4, fixed_abs, tag = 'smem constant byte address 0x4 - core index']
  #allocation1 [shape = 'u32[144,128]{1,0:T(1,128)}', space=vmem, size = 0x12000, scoped, tag = 'internal scratch']
  %s0 = inlined_call_operand.hbm [shape: bf16[128,128], index: 0, kind: input, shape index: {}]
  %s1 = inlined_call_operand.hbm [shape: f32[128,128], index: 1, kind: input, shape index: {}]
  %s2 = inlined_call_operand.hbm [shape: bf16[2,128,128], index: 2, kind: input, shape index: {}]
  %s3 = inlined_call_operand.vmem [shape: f32[2,1,128], index: 3, kind: input, shape index: {}]
  %s4 = inlined_call_operand.hbm [shape: bf16[128,256], index: 4, kind: input, shape index: {}]
  %s5 = inlined_call_operand.vmem [shape: f32[1,256], index: 5, kind: input, shape index: {}]
  %s6 = inlined_call_operand.hbm [shape: f32[128,256], index: 6, kind: output, shape index: {}]
  %s7 = sld [smem:[#allocation0]]
  $region50: #{tpu_custom_call.1} parent=0
    _
  %s9 = ssub.s32 1, %s7
  %s10 = scalar_select 0, %s9, %s7
  $region1: #{tpu_custom_call.1} parent=0
    #allocation2 [shape = 'u8[32768]{0}', space=vmem, size = 0x8000, scoped, tag = 'input window, operand 0, single buffered']
    #allocation3 [shape = 's32[1]{0}', space=sflag, size = 0x4, scoped, tag = 'scoped memory for tpu_custom_call.1']
    #allocation4 [shape = 's32[1]{0}', space=sflag, size = 0x4, scoped, tag = 'scoped memory for tpu_custom_call.1']
    #allocation5 [shape = 'u8[65536]{0}', space=vmem, size = 0x10000, scoped, tag = 'input window, operand 1, single buffered']
    #allocation6 [shape = 's32[1]{0}', space=sflag, size = 0x4, scoped, tag = 'scoped memory for tpu_custom_call.1']
    #allocation7 [shape = 'u8[65536]{0}', space=vmem, size = 0x10000, scoped, tag = 'input window, operand 2, single buffered']
    #allocation8 [shape = 'u8[65536]{0}', space=vmem, size = 0x10000, scoped, tag = 'input window, operand 4, single buffered']
    #allocation9 [shape = 's32[1]{0}', space=sflag, size = 0x4, scoped, tag = 'scoped memory for tpu_custom_call.1']
    #allocation10 [shape = 'u8[131072]{0}', space=vmem, size = 0x20000, scoped, tag = 'output window, operand 0, single buffered']
    %11 = vsyncpa [#allocation3], 0
    %12 = vsyncpa [#allocation6], 0
    %13 = vsyncpa [#allocation9], 0
    %14 = vsyncpa [#allocation4], 0
    // Predicated region
    $region2: #{tpu_custom_call.1} parent=1 // pred_check
      _
    $region3: #{tpu_custom_call.1} parent=1 // pred_check_branch
      %16 = sbr.rel (0) target = $region5
    $region4: #{tpu_custom_call.1} parent=1 // pred_region
      %s18 = ssub.s32 1024, 1024
      %19 = vsyncadd [#allocation3], %s18
      %s20 = sshll.u32 [#allocation2], 4
      %s21 = int_to_ptr.vmem [resolvable:$true] %s20
      %26 = dma.hbm_to_vmem [thread:$0]  %s0, 1024, %s21, [#allocation3], 64, 64, 4
    $region5: #{tpu_custom_call.1} parent=1 // pred_fallthru
      _
    // Predicated region
    $region6: #{tpu_custom_call.1} parent=1 // pred_check
      _
    $region7: #{tpu_custom_call.1} parent=1 // pred_check_branch
      %28 = sbr.rel (0) target = $region9
    $region8: #{tpu_custom_call.1} parent=1 // pred_region
      %s30 = ssub.s32 2048, 2048
      %31 = vsyncadd [#allocation6], %s30
      %s32 = sshll.u32 [#allocation5], 4
      %s33 = int_to_ptr.vmem [resolvable:$true] %s32
      %38 = dma.hbm_to_vmem [thread:$0]  %s1, 2048, %s33, [#allocation6], 128, 128, 8
    $region9: #{tpu_custom_call.1} parent=1 // pred_fallthru
      _
    // Predicated region
    $region10: #{tpu_custom_call.1} parent=1 // pred_check
      _
    $region11: #{tpu_custom_call.1} parent=1 // pred_check_branch
      %40 = sbr.rel (0) target = $region13
    $region12: #{tpu_custom_call.1} parent=1 // pred_region
      %s42 = ssub.s32 2048, 2048
      %43 = vsyncadd [#allocation6], %s42
      %s44 = sshll.u32 [#allocation7], 4
      %s45 = int_to_ptr.vmem [resolvable:$true] %s44
      %50 = dma.hbm_to_vmem [thread:$0]  %s2, 2048, %s45, [#allocation6], 64, 64, 4
    $region13: #{tpu_custom_call.1} parent=1 // pred_fallthru
      _
    // Predicated region
    $region14: #{tpu_custom_call.1} parent=1 // pred_check
      _
    $region15: #{tpu_custom_call.1} parent=1 // pred_check_branch
      %52 = sbr.rel (0) target = $region17
    $region16: #{tpu_custom_call.1} parent=1 // pred_region
      _
    $region17: #{tpu_custom_call.1} parent=1 // pred_fallthru
      _
    // Predicated region
    $region18: #{tpu_custom_call.1} parent=1 // pred_check
      _
    $region19: #{tpu_custom_call.1} parent=1 // pred_check_branch
      %54 = sbr.rel (0) target = $region21
    $region20: #{tpu_custom_call.1} parent=1 // pred_region
      %s56 = ssub.s32 2048, 2048
      %57 = vsyncadd [#allocation9], %s56
      %s58 = sshll.u32 [#allocation8], 4
      %s59 = int_to_ptr.vmem [resolvable:$true] %s58
      %64 = dma.hbm_to_vmem [thread:$0]  %s4, 2048, %s59, [#allocation9], 128, 128, 8
    $region21: #{tpu_custom_call.1} parent=1 // pred_fallthru
      _
    // Predicated region
    $region22: #{tpu_custom_call.1} parent=1 // pred_check
      _
    $region23: #{tpu_custom_call.1} parent=1 // pred_check_branch
      %66 = sbr.rel (0) target = $region25
    $region24: #{tpu_custom_call.1} parent=1 // pred_region
      _
    $region25: #{tpu_custom_call.1} parent=1 // pred_fallthru
      _
    // Predicated region
    $region26: #{tpu_custom_call.1} parent=1 // pred_check
      _
    $region27: #{tpu_custom_call.1} parent=1 // pred_check_branch
      %68 = sbr.rel (0) target = $region29
    $region28: #{tpu_custom_call.1} parent=1 // pred_region
      %69 = dma.done [#allocation3], 1024
    $region29: #{tpu_custom_call.1} parent=1 // pred_fallthru
      _
    // Predicated region
    $region30: #{tpu_custom_call.1} parent=1 // pred_check
      _
    $region31: #{tpu_custom_call.1} parent=1 // pred_check_branch
      %71 = sbr.rel (0) target = $region33
    $region32: #{tpu_custom_call.1} parent=1 // pred_region
      %72 = dma.done [#allocation6], 2048
    $region33: #{tpu_custom_call.1} parent=1 // pred_fallthru
      _
    // Predicated region
    $region34: #{tpu_custom_call.1} parent=1 // pred_check
      _
    $region35: #{tpu_custom_call.1} parent=1 // pred_check_branch
      %74 = sbr.rel (0) target = $region37
    $region36: #{tpu_custom_call.1} parent=1 // pred_region
      %75 = dma.done [#allocation6], 2048
    $region37: #{tpu_custom_call.1} parent=1 // pred_fallthru
      _
    // Predicated region
    $region38: #{tpu_custom_call.1} parent=1 // pred_check
      _
    $region39: #{tpu_custom_call.1} parent=1 // pred_check_branch
      %77 = sbr.rel (0) target = $region41
    $region40: #{tpu_custom_call.1} parent=1 // pred_region
      %78 = dma.done [#allocation9], 2048
    $region41: #{tpu_custom_call.1} parent=1 // pred_fallthru
      _
    %v80 = vld [vmem:[#allocation2] sm:$0xf]
    %v81 = vld [vmem:[#allocation2 + $0x4] sm:$0xf]
    %v82 = vld [vmem:[#allocation2 + $0x8] sm:$0xf]
    %v83 = vld [vmem:[#allocation2 + $0xc] sm:$0xf]
    %v84 = vld [vmem:[#allocation2 + $0x10] sm:$0xf]
    %v85 = vld [vmem:[#allocation2 + $0x14] sm:$0xf]
    %v86 = vld [vmem:[#allocation2 + $0x18] sm:$0xf]
    %v87 = vld [vmem:[#allocation2 + $0x1c] sm:$0xf]
    %v88 = vld [vmem:[#allocation2 + $0x20] sm:$0xf]
    %v89 = vld [vmem:[#allocation2 + $0x24] sm:$0xf]
    %v90 = vld [vmem:[#allocation2 + $0x28] sm:$0xf]
    %v91 = vld [vmem:[#allocation2 + $0x2c] sm:$0xf]
    %v92 = vld [vmem:[#allocation2 + $0x30] sm:$0xf]
    %v93 = vld [vmem:[#allocation2 + $0x34] sm:$0xf]
    %v94 = vld [vmem:[#allocation2 + $0x38] sm:$0xf]
    %v95 = vld [vmem:[#allocation2 + $0x3c] sm:$0xf]
    %v96 = vld [vmem:[#allocation5] sm:$0xff]
    %v97 = vld [vmem:[#allocation5 + $0x8] sm:$0xff]
    %v98 = vld [vmem:[#allocation5 + $0x10] sm:$0xff]
    %v99 = vld [vmem:[#allocation5 + $0x18] sm:$0xff]
    %v100 = vld [vmem:[#allocation5 + $0x20] sm:$0xff]
    %v101 = vld [vmem:[#allocation5 + $0x28] sm:$0xff]
    %v102 = vld [vmem:[#allocation5 + $0x30] sm:$0xff]
    %v103 = vld [vmem:[#allocation5 + $0x38] sm:$0xff]
    %v104 = vld [vmem:[#allocation5 + $0x40] sm:$0xff]
    %v105 = vld [vmem:[#allocation5 + $0x48] sm:$0xff]
    %v106 = vld [vmem:[#allocation5 + $0x50] sm:$0xff]
    %v107 = vld [vmem:[#allocation5 + $0x58] sm:$0xff]
    %v108 = vld [vmem:[#allocation5 + $0x60] sm:$0xff]
    %v109 = vld [vmem:[#allocation5 + $0x68] sm:$0xff]
    %v110 = vld [vmem:[#allocation5 + $0x70] sm:$0xff]
    %v111 = vld [vmem:[#allocation5 + $0x78] sm:$0xff]
    %v112 = vpack.c.bf16 %v97, %v96
    %v113 = vpack.c.bf16 %v99, %v98
    %v114 = vpack.c.bf16 %v101, %v100
    %v115 = vpack.c.bf16 %v103, %v102
    %v116 = vpack.c.bf16 %v105, %v104
    %v117 = vpack.c.bf16 %v107, %v106
    %v118 = vpack.c.bf16 %v109, %v108
    %v119 = vpack.c.bf16 %v111, %v110
    %v136 = vunpack.c.l.b16 %v80
    %v137 = vunpack.c.l.b16 %v81
    %v138 = vunpack.c.l.b16 %v82
    %v139 = vunpack.c.l.b16 %v83
    %v140 = vunpack.c.l.b16 %v84
    %v141 = vunpack.c.l.b16 %v85
    %v142 = vunpack.c.l.b16 %v86
    %v143 = vunpack.c.l.b16 %v87
    %v144 = vunpack.c.l.b16 %v88
    %v145 = vunpack.c.l.b16 %v89
    %v146 = vunpack.c.l.b16 %v90
    %v147 = vunpack.c.l.b16 %v91
    %v148 = vunpack.c.l.b16 %v92
    %v149 = vunpack.c.l.b16 %v93
    %v150 = vunpack.c.l.b16 %v94
    %v151 = vunpack.c.l.b16 %v95
    %v152 = vpack.c.b16 %v137, %v136
    %v153 = vpack.c.b16 %v139, %v138
    %v154 = vpack.c.b16 %v141, %v140
    %v155 = vpack.c.b16 %v143, %v142
    %v156 = vpack.c.b16 %v145, %v144
    %v157 = vpack.c.b16 %v147, %v146
    %v158 = vpack.c.b16 %v149, %v148
    %v159 = vpack.c.b16 %v151, %v150
    %168 = vmatprep.subr.bf16.mxu0 0
    %169 = vmatpush1.bf16.msra.mxu0 %v112
    %170 = vmatprep.subr.bf16.mxu0 0
    %171 = vmatpush1.bf16.msra.mxu0 %v113
    %172 = vmatprep.subr.bf16.mxu0 0
    %173 = vmatpush1.bf16.msra.mxu0 %v114
    %174 = vmatprep.subr.bf16.mxu0 0
    %175 = vmatpush1.bf16.msra.mxu0 %v115
    %176 = vmatprep.subr.bf16.mxu0 0
    %177 = vmatpush1.bf16.msra.mxu0 %v116
    %178 = vmatprep.subr.bf16.mxu0 0
    %179 = vmatpush1.bf16.msra.mxu0 %v117
    %180 = vmatprep.subr.bf16.mxu0 0
    %181 = vmatpush1.bf16.msra.mxu0 %v118
    %182 = vmatprep.subr.bf16.mxu0 0
    %183 = vmatpush1.bf16.msra.mxu0 %v119
    %184 = vmatprep.subr.bf16.mxu0 0
    %185 = vmatpush1.bf16.msra.mxu0 0
    %186 = vmatprep.subr.bf16.mxu0 0
    %187 = vmatpush1.bf16.msra.mxu0 0
    %188 = vmatprep.subr.bf16.mxu0 0
    %189 = vmatpush1.bf16.msra.mxu0 0
    %190 = vmatprep.subr.bf16.mxu0 0
    %191 = vmatpush1.bf16.msra.mxu0 0
    %192 = vmatprep.subr.bf16.mxu0 0
    %193 = vmatpush1.bf16.msra.mxu0 0
    %194 = vmatprep.subr.bf16.mxu0 0
    %195 = vmatpush1.bf16.msra.mxu0 0
    %196 = vmatprep.subr.bf16.mxu0 0
    %197 = vmatpush1.bf16.msra.mxu0 0
    %198 = vmatprep.subr.bf16.mxu0 0
    %199 = vmatpush1.bf16.msra.mxu0 0
    %200 = vmatprep.mubr.bf16.mxu0 0
    %201 = vmatmul.mubr.bf16.gmra.mrb[0].mxu0 %v152
    %v202 = vpop.f32.mrb[0].mxu0
    %v203 = vadd.f32 0.0, %v202
    %v204 = vpop.f32.mrb[0].mxu0
    %v205 = vpop.f32.mrb[0].mxu0
    %v206 = vadd.f32 0.0, %v205
    %v207 = vpop.f32.mrb[0].mxu0
    %208 = vmatprep.mubr.bf16.mxu0 0
    %209 = vmatmul.mubr.bf16.gmra.mrb[0].mxu0 %v153
    %v210 = vpop.f32.mrb[0].mxu0
    %v211 = vadd.f32 0.0, %v210
    %v212 = vpop.f32.mrb[0].mxu0
    %v213 = vpop.f32.mrb[0].mxu0
    %v214 = vadd.f32 0.0, %v213
    %v215 = vpop.f32.mrb[0].mxu0
    %216 = vmatprep.mubr.bf16.mxu0 0
    %217 = vmatmul.mubr.bf16.gmra.mrb[0].mxu0 %v154
    %v218 = vpop.f32.mrb[0].mxu0
    %v219 = vadd.f32 0.0, %v218
    %v220 = vpop.f32.mrb[0].mxu0
    %v221 = vpop.f32.mrb[0].mxu0
    %v222 = vadd.f32 0.0, %v221
    %v223 = vpop.f32.mrb[0].mxu0
    %224 = vmatprep.mubr.bf16.mxu0 0
    %225 = vmatmul.mubr.bf16.gmra.mrb[0].mxu0 %v155
    %v226 = vpop.f32.mrb[0].mxu0
    %v227 = vadd.f32 0.0, %v226
    %v228 = vpop.f32.mrb[0].mxu0
    %v229 = vpop.f32.mrb[0].mxu0
    %v230 = vadd.f32 0.0, %v229
    %v231 = vpop.f32.mrb[0].mxu0
    %232 = vmatprep.mubr.bf16.mxu0 0
    %233 = vmatmul.mubr.bf16.gmra.mrb[0].mxu0 %v156
    %v234 = vpop.f32.mrb[0].mxu0
    %v235 = vadd.f32 0.0, %v234
    %v236 = vpop.f32.mrb[0].mxu0
    %v237 = vpop.f32.mrb[0].mxu0
    %v238 = vadd.f32 0.0, %v237
    %v239 = vpop.f32.mrb[0].mxu0
    %240 = vmatprep.mubr.bf16.mxu0 0
    %241 = vmatmul.mubr.bf16.gmra.mrb[0].mxu0 %v157
    %v242 = vpop.f32.mrb[0].mxu0
    %v243 = vadd.f32 0.0, %v242
    %v244 = vpop.f32.mrb[0].mxu0
    %v245 = vpop.f32.mrb[0].mxu0
    %v246 = vadd.f32 0.0, %v245
    %v247 = vpop.f32.mrb[0].mxu0
    %248 = vmatprep.mubr.bf16.mxu0 0
    %249 = vmatmul.mubr.bf16.gmra.mrb[0].mxu0 %v158
    %v250 = vpop.f32.mrb[0].mxu0
    %v251 = vadd.f32 0.0, %v250
    %v252 = vpop.f32.mrb[0].mxu0
    %v253 = vpop.f32.mrb[0].mxu0
    %v254 = vadd.f32 0.0, %v253
    %v255 = vpop.f32.mrb[0].mxu0
    %256 = vmatprep.mubr.bf16.mxu0 0
    %257 = vmatmul.mubr.bf16.gmra.mrb[0].mxu0 %v159
    %v258 = vpop.f32.mrb[0].mxu0
    %v259 = vadd.f32 0.0, %v258
    %v260 = vpop.f32.mrb[0].mxu0
    %v261 = vpop.f32.mrb[0].mxu0
    %v262 = vadd.f32 0.0, %v261
    %v263 = vpop.f32.mrb[0].mxu0
    %264 = vdwg.mxu0
    %v265 = vpack.c.bf16 %v206, %v203
    %v266 = vpack.c.bf16 %v214, %v211
    %v267 = vpack.c.bf16 %v222, %v219
    %v268 = vpack.c.bf16 %v230, %v227
    %v269 = vpack.c.bf16 %v238, %v235
    %v270 = vpack.c.bf16 %v246, %v243
    %v271 = vpack.c.bf16 %v254, %v251
    %v272 = vpack.c.bf16 %v262, %v259
    %v273 = vld [vmem:[#allocation7] sm:$0xf]
    %v274 = vld [vmem:[#allocation7 + $0x4] sm:$0xf]
    %v275 = vld [vmem:[#allocation7 + $0x8] sm:$0xf]
    %v276 = vld [vmem:[#allocation7 + $0xc] sm:$0xf]
    %v277 = vld [vmem:[#allocation7 + $0x10] sm:$0xf]
    %v278 = vld [vmem:[#allocation7 + $0x14] sm:$0xf]
    %v279 = vld [vmem:[#allocation7 + $0x18] sm:$0xf]
    %v280 = vld [vmem:[#allocation7 + $0x1c] sm:$0xf]
    %v281 = vld [vmem:[#allocation7 + $0x20] sm:$0xf]
    %v282 = vld [vmem:[#allocation7 + $0x24] sm:$0xf]
    %v283 = vld [vmem:[#allocation7 + $0x28] sm:$0xf]
    %v284 = vld [vmem:[#allocation7 + $0x2c] sm:$0xf]
    %v285 = vld [vmem:[#allocation7 + $0x30] sm:$0xf]
    %v286 = vld [vmem:[#allocation7 + $0x34] sm:$0xf]
    %v287 = vld [vmem:[#allocation7 + $0x38] sm:$0xf]
    %v288 = vld [vmem:[#allocation7 + $0x3c] sm:$0xf]
    %v289 = vld [vmem:[%s3] sm:$0x1]
    %v291 = vlaneseq
    %v292 = vshrl.u32 %v291, 7
    %v293 = vsub.s32 0, %v292
    %v294 = vrot.slane %v289, %v293
    %v312 = vunpack.c.l.b16 %v273
    %v313 = vunpack.c.l.b16 %v274
    %v314 = vunpack.c.l.b16 %v275
    %v315 = vunpack.c.l.b16 %v276
    %v316 = vunpack.c.l.b16 %v277
    %v317 = vunpack.c.l.b16 %v278
    %v318 = vunpack.c.l.b16 %v279
    %v319 = vunpack.c.l.b16 %v280
    %v320 = vunpack.c.l.b16 %v281
    %v321 = vunpack.c.l.b16 %v282
    %v322 = vunpack.c.l.b16 %v283
    %v323 = vunpack.c.l.b16 %v284
    %v324 = vunpack.c.l.b16 %v285
    %v325 = vunpack.c.l.b16 %v286
    %v326 = vunpack.c.l.b16 %v287
    %v327 = vunpack.c.l.b16 %v288
    %v328 = vpack.c.b16 %v313, %v312
    %v329 = vpack.c.b16 %v315, %v314
    %v330 = vpack.c.b16 %v317, %v316
    %v331 = vpack.c.b16 %v319, %v318
    %v332 = vpack.c.b16 %v321, %v320
    %v333 = vpack.c.b16 %v323, %v322
    %v334 = vpack.c.b16 %v325, %v324
    %v335 = vpack.c.b16 %v327, %v326
    %344 = vmatprep.subr.bf16.mxu0 0
    %345 = vmatpush1.bf16.msra.mxu0 %v328
    %346 = vmatprep.subr.bf16.mxu0 0
    %347 = vmatpush1.bf16.msra.mxu0 %v329
    %348 = vmatprep.subr.bf16.mxu0 0
    %349 = vmatpush1.bf16.msra.mxu0 %v330
    %350 = vmatprep.subr.bf16.mxu0 0
    %351 = vmatpush1.bf16.msra.mxu0 %v331
    %352 = vmatprep.subr.bf16.mxu0 0
    %353 = vmatpush1.bf16.msra.mxu0 %v332
    %354 = vmatprep.subr.bf16.mxu0 0
    %355 = vmatpush1.bf16.msra.mxu0 %v333
    %356 = vmatprep.subr.bf16.mxu0 0
    %357 = vmatpush1.bf16.msra.mxu0 %v334
    %358 = vmatprep.subr.bf16.mxu0 0
    %359 = vmatpush1.bf16.msra.mxu0 %v335
    %360 = vmatprep.subr.bf16.mxu0 0
    %361 = vmatpush1.bf16.msra.mxu0 0
    %362 = vmatprep.subr.bf16.mxu0 0
    %363 = vmatpush1.bf16.msra.mxu0 0
    %364 = vmatprep.subr.bf16.mxu0 0
    %365 = vmatpush1.bf16.msra.mxu0 0
    %366 = vmatprep.subr.bf16.mxu0 0
    %367 = vmatpush1.bf16.msra.mxu0 0
    %368 = vmatprep.subr.bf16.mxu0 0
    %369 = vmatpush1.bf16.msra.mxu0 0
    %370 = vmatprep.subr.bf16.mxu0 0
    %371 = vmatpush1.bf16.msra.mxu0 0
    %372 = vmatprep.subr.bf16.mxu0 0
    %373 = vmatpush1.bf16.msra.mxu0 0
    %374 = vmatprep.subr.bf16.mxu0 0
    %375 = vmatpush1.bf16.msra.mxu0 0
    %376 = vmatprep.mubr.bf16.mxu0 0
    %377 = vmatmul.mubr.bf16.gmra.mrb[0].mxu0 %v265
    %v378 = vpop.f32.mrb[0].mxu0
    %v379 = vadd.f32 %v294, %v378
    %v380 = vpop.f32.mrb[0].mxu0
    %v381 = vpop.f32.mrb[0].mxu0
    %v382 = vadd.f32 %v294, %v381
    %v383 = vpop.f32.mrb[0].mxu0
    %384 = vmatprep.mubr.bf16.mxu0 0
    %385 = vmatmul.mubr.bf16.gmra.mrb[0].mxu0 %v266
    %v386 = vpop.f32.mrb[0].mxu0
    %v387 = vadd.f32 %v294, %v386
    %v388 = vpop.f32.mrb[0].mxu0
    %v389 = vpop.f32.mrb[0].mxu0
    %v390 = vadd.f32 %v294, %v389
    %v391 = vpop.f32.mrb[0].mxu0
    %392 = vmatprep.mubr.bf16.mxu0 0
    %393 = vmatmul.mubr.bf16.gmra.mrb[0].mxu0 %v267
    %v394 = vpop.f32.mrb[0].mxu0
    %v395 = vadd.f32 %v294, %v394
    %v396 = vpop.f32.mrb[0].mxu0
    %v397 = vpop.f32.mrb[0].mxu0
    %v398 = vadd.f32 %v294, %v397
    %v399 = vpop.f32.mrb[0].mxu0
    %400 = vmatprep.mubr.bf16.mxu0 0
    %401 = vmatmul.mubr.bf16.gmra.mrb[0].mxu0 %v268
    %v402 = vpop.f32.mrb[0].mxu0
    %v403 = vadd.f32 %v294, %v402
    %v404 = vpop.f32.mrb[0].mxu0
    %v405 = vpop.f32.mrb[0].mxu0
    %v406 = vadd.f32 %v294, %v405
    %v407 = vpop.f32.mrb[0].mxu0
    %408 = vmatprep.mubr.bf16.mxu0 0
    %409 = vmatmul.mubr.bf16.gmra.mrb[0].mxu0 %v269
    %v410 = vpop.f32.mrb[0].mxu0
    %v411 = vadd.f32 %v294, %v410
    %v412 = vpop.f32.mrb[0].mxu0
    %v413 = vpop.f32.mrb[0].mxu0
    %v414 = vadd.f32 %v294, %v413
    %v415 = vpop.f32.mrb[0].mxu0
    %416 = vmatprep.mubr.bf16.mxu0 0
    %417 = vmatmul.mubr.bf16.gmra.mrb[0].mxu0 %v270
    %v418 = vpop.f32.mrb[0].mxu0
    %v419 = vadd.f32 %v294, %v418
    %v420 = vpop.f32.mrb[0].mxu0
    %v421 = vpop.f32.mrb[0].mxu0
    %v422 = vadd.f32 %v294, %v421
    %v423 = vpop.f32.mrb[0].mxu0
    %424 = vmatprep.mubr.bf16.mxu0 0
    %425 = vmatmul.mubr.bf16.gmra.mrb[0].mxu0 %v271
    %v426 = vpop.f32.mrb[0].mxu0
    %v427 = vadd.f32 %v294, %v426
    %v428 = vpop.f32.mrb[0].mxu0
    %v429 = vpop.f32.mrb[0].mxu0
    %v430 = vadd.f32 %v294, %v429
    %v431 = vpop.f32.mrb[0].mxu0
    %432 = vmatprep.mubr.bf16.mxu0 0
    %433 = vmatmul.mubr.bf16.gmra.mrb[0].mxu0 %v272
    %v434 = vpop.f32.mrb[0].mxu0
    %v435 = vadd.f32 %v294, %v434
    %v436 = vpop.f32.mrb[0].mxu0
    %v437 = vpop.f32.mrb[0].mxu0
    %v438 = vadd.f32 %v294, %v437
    %v439 = vpop.f32.mrb[0].mxu0
    %440 = vdwg.mxu0
    %v441 = vmax.f32 %v379, 0.0
    %v442 = vmax.f32 %v382, 0.0
    %v443 = vmax.f32 %v387, 0.0
    %v444 = vmax.f32 %v390, 0.0
    %v445 = vmax.f32 %v395, 0.0
    %v446 = vmax.f32 %v398, 0.0
    %v447 = vmax.f32 %v403, 0.0
    %v448 = vmax.f32 %v406, 0.0
    %v449 = vmax.f32 %v411, 0.0
    %v450 = vmax.f32 %v414, 0.0
    %v451 = vmax.f32 %v419, 0.0
    %v452 = vmax.f32 %v422, 0.0
    %v453 = vmax.f32 %v427, 0.0
    %v454 = vmax.f32 %v430, 0.0
    %v455 = vmax.f32 %v435, 0.0
    %v456 = vmax.f32 %v438, 0.0
    %v457 = vpack.c.bf16 %v442, %v441
    %v458 = vpack.c.bf16 %v444, %v443
    %v459 = vpack.c.bf16 %v446, %v445
    %v460 = vpack.c.bf16 %v448, %v447
    %v461 = vpack.c.bf16 %v450, %v449
    %v462 = vpack.c.bf16 %v452, %v451
    %v463 = vpack.c.bf16 %v454, %v453
    %v464 = vpack.c.bf16 %v456, %v455
    %465 = vmatprep.subr.bf16.mxu0 0
    %466 = vmatpush1.bf16.msra.mxu0 %v457
    %467 = vmatprep.subr.bf16.mxu0 0
    %468 = vmatpush1.bf16.msra.mxu0 %v458
    %469 = vmatprep.subr.bf16.mxu0 0
    %470 = vmatpush1.bf16.msra.mxu0 %v459
    %471 = vmatprep.subr.bf16.mxu0 0
    %472 = vmatpush1.bf16.msra.mxu0 %v460
    %473 = vmatprep.subr.bf16.mxu0 0
    %474 = vmatpush1.bf16.msra.mxu0 %v461
    %475 = vmatprep.subr.bf16.mxu0 0
    %476 = vmatpush1.bf16.msra.mxu0 %v462
    %477 = vmatprep.subr.bf16.mxu0 0
    %478 = vmatpush1.bf16.msra.mxu0 %v463
    %479 = vmatprep.subr.bf16.mxu0 0
    %480 = vmatpush1.bf16.msra.mxu0 %v464
    %481 = vmatprep.subr.bf16.mxu0 0
    %482 = vmatpush1.bf16.msra.mxu0 0
    %483 = vmatprep.subr.bf16.mxu0 0
    %484 = vmatpush1.bf16.msra.mxu0 0
    %485 = vmatprep.subr.bf16.mxu0 0
    %486 = vmatpush1.bf16.msra.mxu0 0
    %487 = vmatprep.subr.bf16.mxu0 0
    %488 = vmatpush1.bf16.msra.mxu0 0
    %489 = vmatprep.subr.bf16.mxu0 0
    %490 = vmatpush1.bf16.msra.mxu0 0
    %491 = vmatprep.subr.bf16.mxu0 0
    %492 = vmatpush1.bf16.msra.mxu0 0
    %493 = vmatprep.subr.bf16.mxu0 0
    %494 = vmatpush1.bf16.msra.mxu0 0
    %495 = vmatprep.subr.bf16.mxu0 0
    %496 = vmatpush1.bf16.msra.mxu0 0
    %497 = vmatprep.mubr.bf16.mxu0 0
    %498 = vmatmul.mubr.bf16.gmra.mrb[0].mxu0 %v152
    %v499 = vpop.f32.mrb[0].mxu0
    %v500 = vadd.f32 0.0, %v499
    %v501 = vpop.f32.mrb[0].mxu0
    %v502 = vpop.f32.mrb[0].mxu0
    %v503 = vadd.f32 0.0, %v502
    %v504 = vpop.f32.mrb[0].mxu0
    %505 = vmatprep.mubr.bf16.mxu0 0
    %506 = vmatmul.mubr.bf16.gmra.mrb[0].mxu0 %v153
    %v507 = vpop.f32.mrb[0].mxu0
    %v508 = vadd.f32 0.0, %v507
    %v509 = vpop.f32.mrb[0].mxu0
    %v510 = vpop.f32.mrb[0].mxu0
    %v511 = vadd.f32 0.0, %v510
    %v512 = vpop.f32.mrb[0].mxu0
    %513 = vmatprep.mubr.bf16.mxu0 0
    %514 = vmatmul.mubr.bf16.gmra.mrb[0].mxu0 %v154
    %v515 = vpop.f32.mrb[0].mxu0
    %v516 = vadd.f32 0.0, %v515
    %v517 = vpop.f32.mrb[0].mxu0
    %v518 = vpop.f32.mrb[0].mxu0
    %v519 = vadd.f32 0.0, %v518
    %v520 = vpop.f32.mrb[0].mxu0
    %521 = vmatprep.mubr.bf16.mxu0 0
    %522 = vmatmul.mubr.bf16.gmra.mrb[0].mxu0 %v155
    %v523 = vpop.f32.mrb[0].mxu0
    %v524 = vadd.f32 0.0, %v523
    %v525 = vpop.f32.mrb[0].mxu0
    %v526 = vpop.f32.mrb[0].mxu0
    %v527 = vadd.f32 0.0, %v526
    %v528 = vpop.f32.mrb[0].mxu0
    %529 = vmatprep.mubr.bf16.mxu0 0
    %530 = vmatmul.mubr.bf16.gmra.mrb[0].mxu0 %v156
    %v531 = vpop.f32.mrb[0].mxu0
    %v532 = vadd.f32 0.0, %v531
    %v533 = vpop.f32.mrb[0].mxu0
    %v534 = vpop.f32.mrb[0].mxu0
    %v535 = vadd.f32 0.0, %v534
    %v536 = vpop.f32.mrb[0].mxu0
    %537 = vmatprep.mubr.bf16.mxu0 0
    %538 = vmatmul.mubr.bf16.gmra.mrb[0].mxu0 %v157
    %v539 = vpop.f32.mrb[0].mxu0
    %v540 = vadd.f32 0.0, %v539
    %v541 = vpop.f32.mrb[0].mxu0
    %v542 = vpop.f32.mrb[0].mxu0
    %v543 = vadd.f32 0.0, %v542
    %v544 = vpop.f32.mrb[0].mxu0
    %545 = vmatprep.mubr.bf16.mxu0 0
    %546 = vmatmul.mubr.bf16.gmra.mrb[0].mxu0 %v158
    %v547 = vpop.f32.mrb[0].mxu0
    %v548 = vadd.f32 0.0, %v547
    %v549 = vpop.f32.mrb[0].mxu0
    %v550 = vpop.f32.mrb[0].mxu0
    %v551 = vadd.f32 0.0, %v550
    %v552 = vpop.f32.mrb[0].mxu0
    %553 = vmatprep.mubr.bf16.mxu0 0
    %554 = vmatmul.mubr.bf16.gmra.mrb[0].mxu0 %v159
    %v555 = vpop.f32.mrb[0].mxu0
    %v556 = vadd.f32 0.0, %v555
    %v557 = vpop.f32.mrb[0].mxu0
    %v558 = vpop.f32.mrb[0].mxu0
    %v559 = vadd.f32 0.0, %v558
    %v560 = vpop.f32.mrb[0].mxu0
    %561 = vdwg.mxu0
    %v562 = vpack.c.bf16 %v503, %v500
    %v563 = vpack.c.bf16 %v511, %v508
    %v564 = vpack.c.bf16 %v519, %v516
    %v565 = vpack.c.bf16 %v527, %v524
    %v566 = vpack.c.bf16 %v535, %v532
    %v567 = vpack.c.bf16 %v543, %v540
    %v568 = vpack.c.bf16 %v551, %v548
    %v569 = vpack.c.bf16 %v559, %v556
    %s570 = scalar_lea.vmem [#allocation7], 64
    %v571 = vld [vmem:[%s570] sm:$0xf]
    %v572 = vld [vmem:[%s570 + $0x4] sm:$0xf]
    %v573 = vld [vmem:[%s570 + $0x8] sm:$0xf]
    %v574 = vld [vmem:[%s570 + $0xc] sm:$0xf]
    %v575 = vld [vmem:[%s570 + $0x10] sm:$0xf]
    %v576 = vld [vmem:[%s570 + $0x14] sm:$0xf]
    %v577 = vld [vmem:[%s570 + $0x18] sm:$0xf]
    %v578 = vld [vmem:[%s570 + $0x1c] sm:$0xf]
    %v579 = vld [vmem:[%s570 + $0x20] sm:$0xf]
    %v580 = vld [vmem:[%s570 + $0x24] sm:$0xf]
    %v581 = vld [vmem:[%s570 + $0x28] sm:$0xf]
    %v582 = vld [vmem:[%s570 + $0x2c] sm:$0xf]
    %v583 = vld [vmem:[%s570 + $0x30] sm:$0xf]
    %v584 = vld [vmem:[%s570 + $0x34] sm:$0xf]
    %v585 = vld [vmem:[%s570 + $0x38] sm:$0xf]
    %v586 = vld [vmem:[%s570 + $0x3c] sm:$0xf]
    %s587 = scalar_lea.vmem %s3, 1
    %v588 = vld [vmem:[%s587] sm:$0x1]
    %v590 = vlaneseq
    %v591 = vshrl.u32 %v590, 7
    %v592 = vsub.s32 0, %v591
    %v593 = vrot.slane %v588, %v592
    %v611 = vunpack.c.l.b16 %v571
    %v612 = vunpack.c.l.b16 %v572
    %v613 = vunpack.c.l.b16 %v573
    %v614 = vunpack.c.l.b16 %v574
    %v615 = vunpack.c.l.b16 %v575
    %v616 = vunpack.c.l.b16 %v576
    %v617 = vunpack.c.l.b16 %v577
    %v618 = vunpack.c.l.b16 %v578
    %v619 = vunpack.c.l.b16 %v579
    %v620 = vunpack.c.l.b16 %v580
    %v621 = vunpack.c.l.b16 %v581
    %v622 = vunpack.c.l.b16 %v582
    %v623 = vunpack.c.l.b16 %v583
    %v624 = vunpack.c.l.b16 %v584
    %v625 = vunpack.c.l.b16 %v585
    %v626 = vunpack.c.l.b16 %v586
    %v627 = vpack.c.b16 %v612, %v611
    %v628 = vpack.c.b16 %v614, %v613
    %v629 = vpack.c.b16 %v616, %v615
    %v630 = vpack.c.b16 %v618, %v617
    %v631 = vpack.c.b16 %v620, %v619
    %v632 = vpack.c.b16 %v622, %v621
    %v633 = vpack.c.b16 %v624, %v623
    %v634 = vpack.c.b16 %v626, %v625
    %643 = vmatprep.subr.bf16.mxu0 0
    %644 = vmatpush1.bf16.msra.mxu0 %v627
    %645 = vmatprep.subr.bf16.mxu0 0
    %646 = vmatpush1.bf16.msra.mxu0 %v628
    %647 = vmatprep.subr.bf16.mxu0 0
    %648 = vmatpush1.bf16.msra.mxu0 %v629
    %649 = vmatprep.subr.bf16.mxu0 0
    %650 = vmatpush1.bf16.msra.mxu0 %v630
    %651 = vmatprep.subr.bf16.mxu0 0
    %652 = vmatpush1.bf16.msra.mxu0 %v631
    %653 = vmatprep.subr.bf16.mxu0 0
    %654 = vmatpush1.bf16.msra.mxu0 %v632
    %655 = vmatprep.subr.bf16.mxu0 0
    %656 = vmatpush1.bf16.msra.mxu0 %v633
    %657 = vmatprep.subr.bf16.mxu0 0
    %658 = vmatpush1.bf16.msra.mxu0 %v634
    %659 = vmatprep.subr.bf16.mxu0 0
    %660 = vmatpush1.bf16.msra.mxu0 0
    %661 = vmatprep.subr.bf16.mxu0 0
    %662 = vmatpush1.bf16.msra.mxu0 0
    %663 = vmatprep.subr.bf16.mxu0 0
    %664 = vmatpush1.bf16.msra.mxu0 0
    %665 = vmatprep.subr.bf16.mxu0 0
    %666 = vmatpush1.bf16.msra.mxu0 0
    %667 = vmatprep.subr.bf16.mxu0 0
    %668 = vmatpush1.bf16.msra.mxu0 0
    %669 = vmatprep.subr.bf16.mxu0 0
    %670 = vmatpush1.bf16.msra.mxu0 0
    %671 = vmatprep.subr.bf16.mxu0 0
    %672 = vmatpush1.bf16.msra.mxu0 0
    %673 = vmatprep.subr.bf16.mxu0 0
    %674 = vmatpush1.bf16.msra.mxu0 0
    %675 = vmatprep.mubr.bf16.mxu0 0
    %676 = vmatmul.mubr.bf16.gmra.mrb[0].mxu0 %v562
    %v677 = vpop.f32.mrb[0].mxu0
    %v678 = vadd.f32 %v593, %v677
    %v679 = vpop.f32.mrb[0].mxu0
    %v680 = vpop.f32.mrb[0].mxu0
    %v681 = vadd.f32 %v593, %v680
    %v682 = vpop.f32.mrb[0].mxu0
    %683 = vmatprep.mubr.bf16.mxu0 0
    %684 = vmatmul.mubr.bf16.gmra.mrb[0].mxu0 %v563
    %v685 = vpop.f32.mrb[0].mxu0
    %v686 = vadd.f32 %v593, %v685
    %v687 = vpop.f32.mrb[0].mxu0
    %v688 = vpop.f32.mrb[0].mxu0
    %v689 = vadd.f32 %v593, %v688
    %v690 = vpop.f32.mrb[0].mxu0
    %691 = vmatprep.mubr.bf16.mxu0 0
    %692 = vmatmul.mubr.bf16.gmra.mrb[0].mxu0 %v564
    %v693 = vpop.f32.mrb[0].mxu0
    %v694 = vadd.f32 %v593, %v693
    %v695 = vpop.f32.mrb[0].mxu0
    %v696 = vpop.f32.mrb[0].mxu0
    %v697 = vadd.f32 %v593, %v696
    %v698 = vpop.f32.mrb[0].mxu0
    %699 = vmatprep.mubr.bf16.mxu0 0
    %700 = vmatmul.mubr.bf16.gmra.mrb[0].mxu0 %v565
    %v701 = vpop.f32.mrb[0].mxu0
    %v702 = vadd.f32 %v593, %v701
    %v703 = vpop.f32.mrb[0].mxu0
    %v704 = vpop.f32.mrb[0].mxu0
    %v705 = vadd.f32 %v593, %v704
    %v706 = vpop.f32.mrb[0].mxu0
    %707 = vmatprep.mubr.bf16.mxu0 0
    %708 = vmatmul.mubr.bf16.gmra.mrb[0].mxu0 %v566
    %v709 = vpop.f32.mrb[0].mxu0
    %v710 = vadd.f32 %v593, %v709
    %v711 = vpop.f32.mrb[0].mxu0
    %v712 = vpop.f32.mrb[0].mxu0
    %v713 = vadd.f32 %v593, %v712
    %v714 = vpop.f32.mrb[0].mxu0
    %715 = vmatprep.mubr.bf16.mxu0 0
    %716 = vmatmul.mubr.bf16.gmra.mrb[0].mxu0 %v567
    %v717 = vpop.f32.mrb[0].mxu0
    %v718 = vadd.f32 %v593, %v717
    %v719 = vpop.f32.mrb[0].mxu0
    %v720 = vpop.f32.mrb[0].mxu0
    %v721 = vadd.f32 %v593, %v720
    %v722 = vpop.f32.mrb[0].mxu0
    %723 = vmatprep.mubr.bf16.mxu0 0
    %724 = vmatmul.mubr.bf16.gmra.mrb[0].mxu0 %v568
    %v725 = vpop.f32.mrb[0].mxu0
    %v726 = vadd.f32 %v593, %v725
    %v727 = vpop.f32.mrb[0].mxu0
    %v728 = vpop.f32.mrb[0].mxu0
    %v729 = vadd.f32 %v593, %v728
    %v730 = vpop.f32.mrb[0].mxu0
    %731 = vmatprep.mubr.bf16.mxu0 0
    %732 = vmatmul.mubr.bf16.gmra.mrb[0].mxu0 %v569
    %v733 = vpop.f32.mrb[0].mxu0
    %v734 = vadd.f32 %v593, %v733
    %v735 = vpop.f32.mrb[0].mxu0
    %v736 = vpop.f32.mrb[0].mxu0
    %v737 = vadd.f32 %v593, %v736
    %v738 = vpop.f32.mrb[0].mxu0
    %739 = vdwg.mxu0
    %v740 = vpack.c.bf16 %v681, %v678
    %v741 = vpack.c.bf16 %v689, %v686
    %v742 = vpack.c.bf16 %v697, %v694
    %v743 = vpack.c.bf16 %v705, %v702
    %v744 = vpack.c.bf16 %v713, %v710
    %v745 = vpack.c.bf16 %v721, %v718
    %v746 = vpack.c.bf16 %v729, %v726
    %v747 = vpack.c.bf16 %v737, %v734
    %v748 = vld [vmem:[#allocation8] sm:$0xff]
    %v749 = vld [vmem:[#allocation8 + $0x8] sm:$0xff]
    %v750 = vld [vmem:[#allocation8 + $0x10] sm:$0xff]
    %v751 = vld [vmem:[#allocation8 + $0x18] sm:$0xff]
    %v752 = vld [vmem:[#allocation8 + $0x20] sm:$0xff]
    %v753 = vld [vmem:[#allocation8 + $0x28] sm:$0xff]
    %v754 = vld [vmem:[#allocation8 + $0x30] sm:$0xff]
    %v755 = vld [vmem:[#allocation8 + $0x38] sm:$0xff]
    %v756 = vld [vmem:[#allocation8 + $0x40] sm:$0xff]
    %v757 = vld [vmem:[#allocation8 + $0x48] sm:$0xff]
    %v758 = vld [vmem:[#allocation8 + $0x50] sm:$0xff]
    %v759 = vld [vmem:[#allocation8 + $0x58] sm:$0xff]
    %v760 = vld [vmem:[#allocation8 + $0x60] sm:$0xff]
    %v761 = vld [vmem:[#allocation8 + $0x68] sm:$0xff]
    %v762 = vld [vmem:[#allocation8 + $0x70] sm:$0xff]
    %v763 = vld [vmem:[#allocation8 + $0x78] sm:$0xff]
    %v764 = vld [vmem:[%s5] sm:$0x3]
    %v766 = vlaneseq
    %v767 = vshrl.u32 %v766, 7
    %v768 = vsub.s32 0, %v767
    %v769 = vrot.slane %v764, %v768
    %v770 = vlaneseq
    %v771 = vshrl.u32 %v770, 7
    %v772 = vsub.s32 1, %v771
    %v773 = vrot.slane %v764, %v772
    %v792 = vunpack.c.l.b16 %v748
    %v793 = vunpack.c.h.b16 %v748
    %v794 = vunpack.c.l.b16 %v749
    %v795 = vunpack.c.h.b16 %v749
    %v796 = vunpack.c.l.b16 %v750
    %v797 = vunpack.c.h.b16 %v750
    %v798 = vunpack.c.l.b16 %v751
    %v799 = vunpack.c.h.b16 %v751
    %v800 = vunpack.c.l.b16 %v752
    %v801 = vunpack.c.h.b16 %v752
    %v802 = vunpack.c.l.b16 %v753
    %v803 = vunpack.c.h.b16 %v753
    %v804 = vunpack.c.l.b16 %v754
    %v805 = vunpack.c.h.b16 %v754
    %v806 = vunpack.c.l.b16 %v755
    %v807 = vunpack.c.h.b16 %v755
    %v808 = vunpack.c.l.b16 %v756
    %v809 = vunpack.c.h.b16 %v756
    %v810 = vunpack.c.l.b16 %v757
    %v811 = vunpack.c.h.b16 %v757
    %v812 = vunpack.c.l.b16 %v758
    %v813 = vunpack.c.h.b16 %v758
    %v814 = vunpack.c.l.b16 %v759
    %v815 = vunpack.c.h.b16 %v759
    %v816 = vunpack.c.l.b16 %v760
    %v817 = vunpack.c.h.b16 %v760
    %v818 = vunpack.c.l.b16 %v761
    %v819 = vunpack.c.h.b16 %v761
    %v820 = vunpack.c.l.b16 %v762
    %v821 = vunpack.c.h.b16 %v762
    %v822 = vunpack.c.l.b16 %v763
    %v823 = vunpack.c.h.b16 %v763
    %v824 = vpack.c.b16 %v794, %v792
    %v825 = vpack.c.b16 %v795, %v793
    %v826 = vpack.c.b16 %v798, %v796
    %v827 = vpack.c.b16 %v799, %v797
    %v828 = vpack.c.b16 %v802, %v800
    %v829 = vpack.c.b16 %v803, %v801
    %v830 = vpack.c.b16 %v806, %v804
    %v831 = vpack.c.b16 %v807, %v805
    %v832 = vpack.c.b16 %v810, %v808
    %v833 = vpack.c.b16 %v811, %v809
    %v834 = vpack.c.b16 %v814, %v812
    %v835 = vpack.c.b16 %v815, %v813
    %v836 = vpack.c.b16 %v818, %v816
    %v837 = vpack.c.b16 %v819, %v817
    %v838 = vpack.c.b16 %v822, %v820
    %v839 = vpack.c.b16 %v823, %v821
    %856 = vmatprep.subr.bf16.mxu0 %v825
    %857 = vmatpush1.bf16.msra.mxu0 %v824
    %858 = vmatprep.subr.bf16.mxu0 %v827
    %859 = vmatpush1.bf16.msra.mxu0 %v826
    %860 = vmatprep.subr.bf16.mxu0 %v829
    %861 = vmatpush1.bf16.msra.mxu0 %v828
    %862 = vmatprep.subr.bf16.mxu0 %v831
    %863 = vmatpush1.bf16.msra.mxu0 %v830
    %864 = vmatprep.subr.bf16.mxu0 %v833
    %865 = vmatpush1.bf16.msra.mxu0 %v832
    %866 = vmatprep.subr.bf16.mxu0 %v835
    %867 = vmatpush1.bf16.msra.mxu0 %v834
    %868 = vmatprep.subr.bf16.mxu0 %v837
    %869 = vmatpush1.bf16.msra.mxu0 %v836
    %870 = vmatprep.subr.bf16.mxu0 %v839
    %871 = vmatpush1.bf16.msra.mxu0 %v838
    %872 = vmatprep.subr.bf16.mxu0 0
    %873 = vmatpush1.bf16.msra.mxu0 0
    %874 = vmatprep.subr.bf16.mxu0 0
    %875 = vmatpush1.bf16.msra.mxu0 0
    %876 = vmatprep.subr.bf16.mxu0 0
    %877 = vmatpush1.bf16.msra.mxu0 0
    %878 = vmatprep.subr.bf16.mxu0 0
    %879 = vmatpush1.bf16.msra.mxu0 0
    %880 = vmatprep.subr.bf16.mxu0 0
    %881 = vmatpush1.bf16.msra.mxu0 0
    %882 = vmatprep.subr.bf16.mxu0 0
    %883 = vmatpush1.bf16.msra.mxu0 0
    %884 = vmatprep.subr.bf16.mxu0 0
    %885 = vmatpush1.bf16.msra.mxu0 0
    %886 = vmatprep.subr.bf16.mxu0 0
    %887 = vmatpush1.bf16.msra.mxu0 0
    %888 = vmatprep.mubr.bf16.mxu0 0
    %889 = vmatmul.mubr.bf16.gmra.mrb[0].mxu0 %v740
    %v890 = vpop.f32.mrb[0].mxu0
    %v891 = vadd.f32 %v769, %v890
    %v892 = vpop.f32.mrb[0].mxu0
    %v893 = vadd.f32 %v773, %v892
    %v894 = vpop.f32.mrb[0].mxu0
    %v895 = vadd.f32 %v769, %v894
    %v896 = vpop.f32.mrb[0].mxu0
    %v897 = vadd.f32 %v773, %v896
    %898 = vmatprep.mubr.bf16.mxu0 0
    %899 = vmatmul.mubr.bf16.gmra.mrb[0].mxu0 %v741
    %v900 = vpop.f32.mrb[0].mxu0
    %v901 = vadd.f32 %v769, %v900
    %v902 = vpop.f32.mrb[0].mxu0
    %v903 = vadd.f32 %v773, %v902
    %v904 = vpop.f32.mrb[0].mxu0
    %v905 = vadd.f32 %v769, %v904
    %v906 = vpop.f32.mrb[0].mxu0
    %v907 = vadd.f32 %v773, %v906
    %908 = vmatprep.mubr.bf16.mxu0 0
    %909 = vmatmul.mubr.bf16.gmra.mrb[0].mxu0 %v742
    %v910 = vpop.f32.mrb[0].mxu0
    %v911 = vadd.f32 %v769, %v910
    %v912 = vpop.f32.mrb[0].mxu0
    %v913 = vadd.f32 %v773, %v912
    %v914 = vpop.f32.mrb[0].mxu0
    %v915 = vadd.f32 %v769, %v914
    %v916 = vpop.f32.mrb[0].mxu0
    %v917 = vadd.f32 %v773, %v916
    %918 = vmatprep.mubr.bf16.mxu0 0
    %919 = vmatmul.mubr.bf16.gmra.mrb[0].mxu0 %v743
    %v920 = vpop.f32.mrb[0].mxu0
    %v921 = vadd.f32 %v769, %v920
    %v922 = vpop.f32.mrb[0].mxu0
    %v923 = vadd.f32 %v773, %v922
    %v924 = vpop.f32.mrb[0].mxu0
    %v925 = vadd.f32 %v769, %v924
    %v926 = vpop.f32.mrb[0].mxu0
    %v927 = vadd.f32 %v773, %v926
    %928 = vmatprep.mubr.bf16.mxu0 0
    %929 = vmatmul.mubr.bf16.gmra.mrb[0].mxu0 %v744
    %v930 = vpop.f32.mrb[0].mxu0
    %v931 = vadd.f32 %v769, %v930
    %v932 = vpop.f32.mrb[0].mxu0
    %v933 = vadd.f32 %v773, %v932
    %v934 = vpop.f32.mrb[0].mxu0
    %v935 = vadd.f32 %v769, %v934
    %v936 = vpop.f32.mrb[0].mxu0
    %v937 = vadd.f32 %v773, %v936
    %938 = vmatprep.mubr.bf16.mxu0 0
    %939 = vmatmul.mubr.bf16.gmra.mrb[0].mxu0 %v745
    %v940 = vpop.f32.mrb[0].mxu0
    %v941 = vadd.f32 %v769, %v940
    %v942 = vpop.f32.mrb[0].mxu0
    %v943 = vadd.f32 %v773, %v942
    %v944 = vpop.f32.mrb[0].mxu0
    %v945 = vadd.f32 %v769, %v944
    %v946 = vpop.f32.mrb[0].mxu0
    %v947 = vadd.f32 %v773, %v946
    %948 = vmatprep.mubr.bf16.mxu0 0
    %949 = vmatmul.mubr.bf16.gmra.mrb[0].mxu0 %v746
    %v950 = vpop.f32.mrb[0].mxu0
    %v951 = vadd.f32 %v769, %v950
    %v952 = vpop.f32.mrb[0].mxu0
    %v953 = vadd.f32 %v773, %v952
    %v954 = vpop.f32.mrb[0].mxu0
    %v955 = vadd.f32 %v769, %v954
    %v956 = vpop.f32.mrb[0].mxu0
    %v957 = vadd.f32 %v773, %v956
    %958 = vmatprep.mubr.bf16.mxu0 0
    %959 = vmatmul.mubr.bf16.gmra.mrb[0].mxu0 %v747
    %v960 = vpop.f32.mrb[0].mxu0
    %v961 = vadd.f32 %v769, %v960
    %v962 = vpop.f32.mrb[0].mxu0
    %v963 = vadd.f32 %v773, %v962
    %v964 = vpop.f32.mrb[0].mxu0
    %v965 = vadd.f32 %v769, %v964
    %v966 = vpop.f32.mrb[0].mxu0
    %v967 = vadd.f32 %v773, %v966
    %968 = vdwg.mxu0
    %969 = vst [vmem:[#allocation10] sm:$0xff] %v891
    %970 = vst [vmem:[#allocation10 + $0x8] sm:$0xff] %v893
    %971 = vst [vmem:[#allocation10 + $0x10] sm:$0xff] %v895
    %972 = vst [vmem:[#allocation10 + $0x18] sm:$0xff] %v897
    %973 = vst [vmem:[#allocation10 + $0x20] sm:$0xff] %v901
    %974 = vst [vmem:[#allocation10 + $0x28] sm:$0xff] %v903
    %975 = vst [vmem:[#allocation10 + $0x30] sm:$0xff] %v905
    %976 = vst [vmem:[#allocation10 + $0x38] sm:$0xff] %v907
    %977 = vst [vmem:[#allocation10 + $0x40] sm:$0xff] %v911
    %978 = vst [vmem:[#allocation10 + $0x48] sm:$0xff] %v913
    %979 = vst [vmem:[#allocation10 + $0x50] sm:$0xff] %v915
    %980 = vst [vmem:[#allocation10 + $0x58] sm:$0xff] %v917
    %981 = vst [vmem:[#allocation10 + $0x60] sm:$0xff] %v921
    %982 = vst [vmem:[#allocation10 + $0x68] sm:$0xff] %v923
    %983 = vst [vmem:[#allocation10 + $0x70] sm:$0xff] %v925
    %984 = vst [vmem:[#allocation10 + $0x78] sm:$0xff] %v927
    %985 = vst [vmem:[#allocation10 + $0x80] sm:$0xff] %v931
    %986 = vst [vmem:[#allocation10 + $0x88] sm:$0xff] %v933
    %987 = vst [vmem:[#allocation10 + $0x90] sm:$0xff] %v935
    %988 = vst [vmem:[#allocation10 + $0x98] sm:$0xff] %v937
    %989 = vst [vmem:[#allocation10 + $0xa0] sm:$0xff] %v941
    %990 = vst [vmem:[#allocation10 + $0xa8] sm:$0xff] %v943
    %991 = vst [vmem:[#allocation10 + $0xb0] sm:$0xff] %v945
    %992 = vst [vmem:[#allocation10 + $0xb8] sm:$0xff] %v947
    %993 = vst [vmem:[#allocation10 + $0xc0] sm:$0xff] %v951
    %994 = vst [vmem:[#allocation10 + $0xc8] sm:$0xff] %v953
    %995 = vst [vmem:[#allocation10 + $0xd0] sm:$0xff] %v955
    %996 = vst [vmem:[#allocation10 + $0xd8] sm:$0xff] %v957
    %997 = vst [vmem:[#allocation10 + $0xe0] sm:$0xff] %v961
    %998 = vst [vmem:[#allocation10 + $0xe8] sm:$0xff] %v963
    %999 = vst [vmem:[#allocation10 + $0xf0] sm:$0xff] %v965
    %1000 = vst [vmem:[#allocation10 + $0xf8] sm:$0xff] %v967
    // Predicated region
    $region42: #{tpu_custom_call.1} parent=1 // pred_check
      _
    $region43: #{tpu_custom_call.1} parent=1 // pred_check_branch
      %1002 = sbr.rel (0) target = $region45
    $region44: #{tpu_custom_call.1} parent=1 // pred_region
      %s1004 = ssub.s32 4096, 4096
      %1005 = vsyncadd [#allocation4], %s1004
      %s1006 = sshll.u32 [#allocation10], 4
      %s1007 = int_to_ptr.vmem [resolvable:$true] %s1006
      %1012 = dma.vmem_to_hbm [thread:$0]  %s1007, 4096, %s6, [#allocation4], 256, 256, 16
    $region45: #{tpu_custom_call.1} parent=1 // pred_fallthru
      _
    // Predicated region
    $region46: #{tpu_custom_call.1} parent=1 // pred_check
      _
    $region47: #{tpu_custom_call.1} parent=1 // pred_check_branch
      %1014 = sbr.rel (0) target = $region49
    $region48: #{tpu_custom_call.1} parent=1 // pred_region
      %1015 = dma.done [#allocation4], 4096
    $region49: #{tpu_custom_call.1} parent=1 // pred_fallthru
      _
    %1016 = vsyncpa [#allocation3], 1
    %1017 = vsyncpa [#allocation6], 1
    %1018 = vsyncpa [#allocation9], 1
    %1019 = vsyncpa [#allocation4], 1

</llo_original>
